<compile_context>
chip_gen: v5e
topology: v5e:2x2
jax: 0.10.0
libtpu: 0.0.40
codegen_flags: <defaults>
</compile_context>

<pallas_src>
import functools

import numpy as np
import jax
import jax.numpy as jnp
from jax.experimental import pallas as pl
from jax.experimental.pallas import tpu as pltpu


# ---------------------------------------------------------------------------
# Kernel
# ---------------------------------------------------------------------------
def _penc_kernel(*refs, cx, cyz):
    """Broadcast precomputed slabs into the (C, TX, YZ_pad) output tile."""
    out_ref = refs[-1]
    _, TX, YZL = out_ref.shape
    idx = 0
    if cx > 0:
        x_slab = refs[idx][...]              # (cx, TX, 1) f32
        idx += 1
        out_ref[0:cx, :, :] = jnp.broadcast_to(
            x_slab, (cx, TX, YZL)).astype(out_ref.dtype)
    if cyz > 0:
        yz_slab = refs[idx][...]             # (cyz, 1, YZ_pad) f32
        idx += 1
        out_ref[cx:cx + cyz, :, :] = jnp.broadcast_to(
            yz_slab, (cyz, TX, YZL)).astype(out_ref.dtype)


# ---------------------------------------------------------------------------
# Hardware-aware sizing helpers
# ---------------------------------------------------------------------------
def _vmem_capacity_bytes():
    try:
        return int(pltpu.get_tpu_info().vmem_capacity_bytes)
    except Exception:
        return 64 << 20   # conservative fallback (v7x-sized VMEM)


def _has_two_tensorcores():
    """True only for chips where a 'parallel' grid axis shards across 2 TCs."""
    try:
        kind = jax.devices()[0].device_kind.lower()
    except Exception:
        return False
    if "v7" in kind or "7x" in kind:
        return True
    if "lite" in kind or "v5e" in kind or "v6" in kind:
        return False
    if "v4" in kind or "v5p" in kind:
        return True
    return False


def _choose_tx(X, plane_bytes, *, align, target_bytes, allow_split):
    """x-planes per grid step (multiple of `align`, or all of X)."""
    tx = int(max(1, min(X, target_bytes // max(1, plane_bytes))))
    if tx < X:
        tx = (tx // align) * align
        if tx == 0:
            # A single x-plane already exceeds the target; smallest legal tile.
            tx = min(X, align)
    else:
        tx = X
    # Only on 2-TensorCore chips: keep >=2 sizable steps so the 'parallel'
    # grid axis can be sharded across the cores.
    if allow_split and tx == X and X >= 2 * align and X * plane_bytes >= (16 << 20):
        half = (X // 2) // align * align
        if half >= align:
            tx = half
    return tx


# ---------------------------------------------------------------------------
# Module
# ---------------------------------------------------------------------------
class PositionalEncoding3D:
    """JAX/Pallas port of the PyTorch PositionalEncoding3D module."""

    def __init__(self, channels):
        self.org_channels = channels
        ch = int(np.ceil(channels / 6) * 2)
        if ch % 2:
            ch += 1
        self.channels = ch
        self.inv_freq = (
            1.0 / 10000 ** (np.arange(0, ch, 2, dtype=np.float32) / ch)
        ).astype(np.float32)

    def __call__(self, tensor):
        if tensor.ndim != 5:
            raise RuntimeError("The input tensor has to be 5d!")
        B, orig_ch, X, Y, Z = tensor.shape
        ch = self.channels
        dtype = tensor.dtype
        itemsize = int(jnp.dtype(dtype).itemsize)
        YZ = Y * Z
        YZ_pad = -(-YZ // 128) * 128          # lane-dense stores

        # Per output channel c (after torch's [..., :orig_ch] slice + permute):
        #   axis   = c // ch   (0 -> x, 1 -> y, 2 -> z)
        #   freq   = inv_freq[(c % ch) // 2]
        #   parity = (c % ch) % 2   (0 -> sin, 1 -> cos)
        c = np.arange(orig_ch)
        axis_sel = c // ch
        k_idx = (c % ch) // 2
        parity = (c % ch) % 2

        cx = int(min(ch, orig_ch))            # x channels: [0, cx)
        cyz = int(orig_ch - cx)               # y/z channels: [cx, orig_ch)

        # -------- tile sizing (generation aware) --------
        cap = _vmem_capacity_bytes()
        target = min(max(cap // 4, 4 << 20), 32 << 20)   # ~16 MiB v7x, ~32 MiB v5e/v6e
        align = {4: 8, 2: 16, 1: 32}.get(itemsize, 8)    # packed-dtype row alignment
        plane_bytes = orig_ch * YZ_pad * itemsize
        tx = _choose_tx(X, plane_bytes, align=align, target_bytes=target,
                        allow_split=_has_two_tensorcores())
        n_steps = -(-X // tx)

        # -------- precompute slabs on host (true sin/cos, f32) --------
        inv_f = self.inv_freq

        pos_x = np.arange(X, dtype=np.float32)
        ang_x = inv_f[k_idx[:cx]][:, None] * pos_x[None, :]            # (cx, X)
        x_slab_np = np.where(parity[:cx, None] == 0,
                             np.sin(ang_x), np.cos(ang_x)).astype(np.float32)
        x_slab = jnp.asarray(x_slab_np.reshape(cx, X, 1))

        inputs = [x_slab]
        in_specs = [pl.BlockSpec((cx, tx, 1), lambda i: (0, i, 0))]

        if cyz > 0:
            si = np.arange(YZ)
            y_pos = (si // Z).astype(np.float32)
            z_pos = (si % Z).astype(np.float32)
            pos_yz = np.where(axis_sel[cx:, None] == 1,
                              y_pos[None, :], z_pos[None, :])           # (cyz, YZ)
            ang_yz = inv_f[k_idx[cx:]][:, None] * pos_yz
            yz_slab_np = np.where(parity[cx:, None] == 0,
                                  np.sin(ang_yz), np.cos(ang_yz)).astype(np.float32)
            if YZ_pad > YZ:
                yz_slab_np = np.pad(yz_slab_np, ((0, 0), (0, YZ_pad - YZ)))
            yz_slab = jnp.asarray(yz_slab_np.reshape(cyz, 1, YZ_pad))
            inputs.append(yz_slab)
            in_specs.append(pl.BlockSpec((cyz, 1, YZ_pad), lambda i: (0, 0, 0)))

        # -------- VMEM budget (double-buffered output + f32 temporaries) ----
        tile_out = orig_ch * tx * YZ_pad * itemsize
        tile_f32 = orig_ch * tx * YZ_pad * 4
        slab_bytes = 2 * (cx * X * 4 + cyz * YZ_pad * 4)
        need = 2 * tile_out + tile_f32 + slab_bytes + (4 << 20)
        vmem_hi = max(min(cap - (8 << 20), 100 << 20), 32 << 20)
        vmem_limit = int(min(max(need, 32 << 20), vmem_hi))

        n_out = orig_ch * X * YZ_pad
        cost = pl.CostEstimate(
            flops=int(n_out),
            transcendentals=0,
            bytes_accessed=int(n_out * itemsize
                               + n_steps * cx * tx * 4
                               + cyz * YZ_pad * 4),
        )

        enc = pl.pallas_call(
            functools.partial(_penc_kernel, cx=cx, cyz=cyz),
            out_shape=jax.ShapeDtypeStruct((orig_ch, X, YZ_pad), dtype),
            grid=(n_steps,),
            in_specs=in_specs,
            out_specs=pl.BlockSpec((orig_ch, tx, YZ_pad), lambda i: (0, i, 0)),
            compiler_params=pltpu.CompilerParams(
                dimension_semantics=("parallel",),
                vmem_limit_bytes=vmem_limit,
            ),
            cost_estimate=cost,
        )(*inputs)

        # Drop the lane padding (if any), reshape, broadcast over batch outside
        # the kernel (fuses into the consumer; the kernel never writes B copies).
        # TODO(synk): if the caller's add doesn't fuse the broadcast, return the
        # unbroadcast (C, X, Y, Z) encoding and let the caller broadcast.
        if YZ_pad > YZ:
            enc = enc[:, :, :YZ]
        enc = enc.reshape(orig_ch, X, Y, Z)
        return jnp.broadcast_to(enc[None], (B, orig_ch, X, Y, Z)).astype(dtype)


# ---------------------------------------------------------------------------
# Pure-JAX reference (replicates the PyTorch forward exactly)
# ---------------------------------------------------------------------------
def _reference_penc(shape, dtype, module):
    B, orig_ch, X, Y, Z = shape
    ch = module.channels
    inv_freq = jnp.asarray(module.inv_freq)

    def get_emb(sin_inp):
        e = jnp.stack([jnp.sin(sin_inp), jnp.cos(sin_inp)], axis=-1)
        return e.reshape(sin_inp.shape[0], -1)

    px = jnp.arange(X, dtype=jnp.float32)
    py = jnp.arange(Y, dtype=jnp.float32)
    pz = jnp.arange(Z, dtype=jnp.float32)
    ex = get_emb(px[:, None] * inv_freq[None, :])[:, None, None, :]
    ey = get_emb(py[:, None] * inv_freq[None, :])[None, :, None, :]
    ez = get_emb(pz[:, None] * inv_freq[None, :])[None, None, :, :]

    emb = jnp.zeros((X, Y, Z, ch * 3), dtype=dtype)
    emb = emb.at[..., :ch].set(jnp.broadcast_to(ex, (X, Y, Z, ch)).astype(dtype))
    emb = emb.at[..., ch:2 * ch].set(jnp.broadcast_to(ey, (X, Y, Z, ch)).astype(dtype))
    emb = emb.at[..., 2 * ch:].set(jnp.broadcast_to(ez, (X, Y, Z, ch)).astype(dtype))

    out = jnp.broadcast_to(emb[None, ..., :orig_ch], (B, X, Y, Z, orig_ch))
    return jnp.transpose(out, (0, 4, 1, 2, 3)).astype(dtype)


if __name__ == "__main__":
    key = jax.random.PRNGKey(0)

    # Case 1: Y*Z lane-aligned (16*16 = 256).
    B, C, X, Y, Z = 2, 10, 8, 16, 16
    x = jax.random.normal(key, (B, C, X, Y, Z), dtype=jnp.float32)
    module = PositionalEncoding3D(C)
    out = jax.block_until_ready(module(x))
    assert out.shape == (B, C, X, Y, Z), out.shape
    ref = jax.block_until_ready(_reference_penc(x.shape, x.dtype, module))
    np.testing.assert_allclose(np.asarray(out), np.asarray(ref), rtol=1e-5, atol=1e-5)

    # Case 2: Y*Z NOT a multiple of 128 (exercises the lane-padding path).
    B2, C2, X2, Y2, Z2 = 1, 7, 4, 5, 6
    x2 = jax.random.normal(jax.random.PRNGKey(1), (B2, C2, X2, Y2, Z2), dtype=jnp.float32)
    module2 = PositionalEncoding3D(C2)
    out2 = jax.block_until_ready(module2(x2))
    ref2 = jax.block_until_ready(_reference_penc(x2.shape, x2.dtype, module2))
    np.testing.assert_allclose(np.asarray(out2), np.asarray(ref2), rtol=1e-5, atol=1e-5)

    print("KERNEL_OK")
</pallas_src>

<mosaic_0001>
module attributes {stable_mosaic.version = 11 : i64} {
  func.func @_penc_kernel(%arg0: i32, %arg1: memref<4x8x1xf32, #tpu.memory_space<vmem>>, %arg2: memref<6x1x256xf32, #tpu.memory_space<vmem>>, %arg3: memref<10x8x256xf32, #tpu.memory_space<vmem>>) attributes {dimension_semantics = [#tpu.dimension_semantics<parallel>], iteration_bounds = array<i64: 1>, scalar_prefetch = 0 : i64, scratch_operands = 0 : i64, tpu.core_type = #tpu.core_type<tc>, window_params = [{transform_indices = @transform_0, window_bounds = array<i64: 4, 8, 1>}, {pipeline_mode = #tpu.pipeline_mode<synchronous>, transform_indices = @transform_1, window_bounds = array<i64: 6, 1, 256>}, {transform_indices = @transform_2, window_bounds = array<i64: 10, 8, 256>}]} {
    %c0 = arith.constant 0 : index
    %c0_0 = arith.constant 0 : index
    %c0_1 = arith.constant 0 : index
    %0 = vector.load %arg1[%c0, %c0_0, %c0_1] : memref<4x8x1xf32, #tpu.memory_space<vmem>>, vector<4x8x1xf32>
    %1 = vector.shape_cast %0 : vector<4x8x1xf32> to vector<4x8x1xf32>
    %2 = vector.broadcast %1 : vector<4x8x1xf32> to vector<4x8x256xf32>
    %c0_2 = arith.constant 0 : index
    %c0_3 = arith.constant 0 : index
    %c0_4 = arith.constant 0 : index
    %3 = vector.load %arg3[%c0_2, %c0_3, %c0_4] : memref<10x8x256xf32, #tpu.memory_space<vmem>>, vector<4x8x256xf32>
    tpu.vector_store %arg3[%c0_2, %c0_3, %c0_4], %2 {strides = array<i32>} : memref<10x8x256xf32, #tpu.memory_space<vmem>>, vector<4x8x256xf32>,
    %c0_5 = arith.constant 0 : index
    %c0_6 = arith.constant 0 : index
    %c0_7 = arith.constant 0 : index
    %4 = vector.load %arg2[%c0_5, %c0_6, %c0_7] : memref<6x1x256xf32, #tpu.memory_space<vmem>>, vector<6x1x256xf32>
    %5 = vector.shape_cast %4 : vector<6x1x256xf32> to vector<6x1x256xf32>
    %6 = vector.broadcast %5 : vector<6x1x256xf32> to vector<6x8x256xf32>
    %c4 = arith.constant 4 : index
    %c0_8 = arith.constant 0 : index
    %c0_9 = arith.constant 0 : index
    %7 = vector.load %arg3[%c4, %c0_8, %c0_9] : memref<10x8x256xf32, #tpu.memory_space<vmem>>, vector<6x8x256xf32>
    tpu.vector_store %arg3[%c4, %c0_8, %c0_9], %6 {strides = array<i32>} : memref<10x8x256xf32, #tpu.memory_space<vmem>>, vector<6x8x256xf32>,
    return
  }
  func.func @transform_0(%arg0: i32) -> (i32, i32, i32) {
    %c0_i32 = arith.constant 0 : i32
    %c0_i32_0 = arith.constant 0 : i32
    %c0_i32_1 = arith.constant 0 : i32
    return %c0_i32, %arg0, %c0_i32_0 : i32, i32, i32
  }
  func.func @transform_1(%arg0: i32) -> (i32, i32, i32) {
    %c0_i32 = arith.constant 0 : i32
    %c0_i32_0 = arith.constant 0 : i32
    %c0_i32_1 = arith.constant 0 : i32
    %c0_i32_2 = arith.constant 0 : i32
    return %c0_i32, %c0_i32_0, %c0_i32_1 : i32, i32, i32
  }
  func.func @transform_2(%arg0: i32) -> (i32, i32, i32) {
    %c0_i32 = arith.constant 0 : i32
    %c0_i32_0 = arith.constant 0 : i32
    %c0_i32_1 = arith.constant 0 : i32
    return %c0_i32, %arg0, %c0_i32_0 : i32, i32, i32
  }
}

</mosaic_0001>

<llo_original>
// kernel: tpu_custom_call.1
$region0: #{tpu_custom_call.1}
  #allocation0 [shape = 'u32[]', space=smem, size = 0x4, offset = 0x4, fixed_abs, tag = 'smem constant byte address 0x4 - core index']
  #allocation1 [shape = 'u32[72,128]{1,0:T(1,128)}', space=vmem, size = 0x9000, scoped, tag = 'internal scratch']
  %s0 = inlined_call_operand.vmem [shape: f32[4,8,1], index: 0, kind: input, shape index: {}]
  %s1 = inlined_call_operand.vmem [shape: f32[6,1,256], index: 1, kind: input, shape index: {}]
  %s2 = inlined_call_operand.hbm [shape: f32[10,8,256], index: 2, kind: output, shape index: {}]
  %s3 = sld [smem:[#allocation0]]
  $region18: #{tpu_custom_call.1} parent=0
    _
  %s5 = ssub.s32 1, %s3
  %s6 = scalar_select 0, %s5, %s3
  $region1: #{tpu_custom_call.1} parent=0
    #allocation2 [shape = 'u8[81920]{0}', space=vmem, size = 0x14000, scoped, tag = 'output window, operand 0, single buffered']
    #allocation3 [shape = 's32[1]{0}', space=sflag, size = 0x4, scoped, tag = 'scoped memory for tpu_custom_call.1']
    %7 = vsyncpa [#allocation3], 0
    // Predicated region
    $region2: #{tpu_custom_call.1} parent=1 // pred_check
      _
    $region3: #{tpu_custom_call.1} parent=1 // pred_check_branch
      %9 = sbr.rel (0) target = $region5
    $region4: #{tpu_custom_call.1} parent=1 // pred_region
      _
    $region5: #{tpu_custom_call.1} parent=1 // pred_fallthru
      _
    // Predicated region
    $region6: #{tpu_custom_call.1} parent=1 // pred_check
      _
    $region7: #{tpu_custom_call.1} parent=1 // pred_check_branch
      %11 = sbr.rel (0) target = $region9
    $region8: #{tpu_custom_call.1} parent=1 // pred_region
      _
    $region9: #{tpu_custom_call.1} parent=1 // pred_fallthru
      _
    %v12 = vld [vmem:[%s0] sm:$0xff]
    %v13 = vld [vmem:[%s0 + $0x8] sm:$0xff]
    %v14 = vld [vmem:[%s0 + $0x10] sm:$0xff]
    %v15 = vld [vmem:[%s0 + $0x18] sm:$0xff]
    %17 = vset.pattern.permute.xlu0 0
    %18 = vperm.xlu0 %17, %v12
    %v19 = vpop.permute.xlu0 %18
    %22 = vset.pattern.permute.xlu0 0
    %23 = vperm.xlu0 %22, %v13
    %v24 = vpop.permute.xlu0 %23
    %27 = vset.pattern.permute.xlu0 0
    %28 = vperm.xlu0 %27, %v14
    %v29 = vpop.permute.xlu0 %28
    %32 = vset.pattern.permute.xlu0 0
    %33 = vperm.xlu0 %32, %v15
    %v34 = vpop.permute.xlu0 %33
    %36 = vst [vmem:[#allocation2] sm:$0xff] %v19
    %37 = vst [vmem:[#allocation2 + $0x8] sm:$0xff] %v19
    %38 = vst [vmem:[#allocation2 + $0x10] sm:$0xff] %v24
    %39 = vst [vmem:[#allocation2 + $0x18] sm:$0xff] %v24
    %40 = vst [vmem:[#allocation2 + $0x20] sm:$0xff] %v29
    %41 = vst [vmem:[#allocation2 + $0x28] sm:$0xff] %v29
    %42 = vst [vmem:[#allocation2 + $0x30] sm:$0xff] %v34
    %43 = vst [vmem:[#allocation2 + $0x38] sm:$0xff] %v34
    %v44 = vld [vmem:[%s1] sm:$0x3]
    %v45 = vld [vmem:[%s1 + $0x2] sm:$0x3]
    %v46 = vld [vmem:[%s1 + $0x4] sm:$0x3]
    %v47 = vld [vmem:[%s1 + $0x6] sm:$0x3]
    %v48 = vld [vmem:[%s1 + $0x8] sm:$0x3]
    %v49 = vld [vmem:[%s1 + $0xa] sm:$0x3]
    %v56 = vperm.slane %v44, 0
    %v57 = vperm.slane %v44, 1
    %v58 = vperm.slane %v45, 0
    %v59 = vperm.slane %v45, 1
    %v60 = vperm.slane %v46, 0
    %v61 = vperm.slane %v46, 1
    %v62 = vperm.slane %v47, 0
    %v63 = vperm.slane %v47, 1
    %v64 = vperm.slane %v48, 0
    %v65 = vperm.slane %v48, 1
    %v66 = vperm.slane %v49, 0
    %v67 = vperm.slane %v49, 1
    %s80 = scalar_lea.vmem [#allocation2], 64
    %81 = vst [vmem:[%s80] sm:$0xff] %v56
    %82 = vst [vmem:[%s80 + $0x8] sm:$0xff] %v57
    %83 = vst [vmem:[%s80 + $0x10] sm:$0xff] %v58
    %84 = vst [vmem:[%s80 + $0x18] sm:$0xff] %v59
    %85 = vst [vmem:[%s80 + $0x20] sm:$0xff] %v60
    %86 = vst [vmem:[%s80 + $0x28] sm:$0xff] %v61
    %87 = vst [vmem:[%s80 + $0x30] sm:$0xff] %v62
    %88 = vst [vmem:[%s80 + $0x38] sm:$0xff] %v63
    %89 = vst [vmem:[%s80 + $0x40] sm:$0xff] %v64
    %90 = vst [vmem:[%s80 + $0x48] sm:$0xff] %v65
    %91 = vst [vmem:[%s80 + $0x50] sm:$0xff] %v66
    %92 = vst [vmem:[%s80 + $0x58] sm:$0xff] %v67
    // Predicated region
    $region10: #{tpu_custom_call.1} parent=1 // pred_check
      _
    $region11: #{tpu_custom_call.1} parent=1 // pred_check_branch
      %94 = sbr.rel (0) target = $region13
    $region12: #{tpu_custom_call.1} parent=1 // pred_region
      %96 = vsyncadd [#allocation3], 0
      %s97 = sshll.u32 [#allocation2], 4
      %s98 = int_to_ptr.vmem [resolvable:$true] %s97
      %s99 = sshll.u32 %s2, 4
      %s100 = int_to_ptr.hbm [resolvable:$true] %s99
      %105 = dma.vmem_to_hbm [thread:$0]  %s98, 2560, %s100, [#allocation3], 256, 256, 16
    $region13: #{tpu_custom_call.1} parent=1 // pred_fallthru
      _
    // Predicated region
    $region14: #{tpu_custom_call.1} parent=1 // pred_check
      _
    $region15: #{tpu_custom_call.1} parent=1 // pred_check_branch
      %107 = sbr.rel (0) target = $region17
    $region16: #{tpu_custom_call.1} parent=1 // pred_region
      %109 = dma.done [#allocation3], 2560
    $region17: #{tpu_custom_call.1} parent=1 // pred_fallthru
      _
    %110 = vsyncpa [#allocation3], 1

</llo_original>
